<compile_context>
chip_gen: v7x
topology: tpu7x:2x2x1
jax: 0.10.0
libtpu: 0.0.40
codegen_flags: <defaults>
</compile_context>

<pallas_src>
import jax
import jax.numpy as jnp
import numpy as np
from jax import lax
from jax.experimental import pallas as pl
from jax.experimental.pallas import tpu as pltpu

W_OUT = 20  # AdaptiveMaxPool2d target width


def _vmem_capacity_bytes():
    """Best-effort VMEM capacity query; conservative fallback if unavailable."""
    try:
        info = pltpu.get_tpu_info()
        cap = getattr(info, "vmem_capacity_bytes", None)
        if cap:
            return int(cap)
    except Exception:
        pass
    return 64 * 1024 * 1024  # assume the smallest (v7x per-TC) if unknown


def _pick_fold(h, w):
    """Rows of H folded into the lane axis so lanes are ~fully used (W<128)."""
    if w >= 128:
        return 1
    target_r = -(-128 // w)                       # ceil(128 / W)
    max_r = max(1, min(h, max(target_r, 1024 // max(w, 1))))
    for d in range(target_r, max_r + 1):          # smallest divisor >= target
        if h % d == 0:
            return d
    best = 1
    for d in range(1, min(target_r, h) + 1):      # else largest divisor below
        if h % d == 0:
            best = d
    return best


def _build_selection(r, w, pw, w_out):
    """0/1 matrix folding pool-window compaction + conv-1x3 tap shifts.

    After the roll max-trees, lane (r-1)*w + (j+1)*pw - 1 of the (C, r*w)
    running max holds the max of pooling window j over ALL H rows.  The three
    column blocks gather the [left | center | right] shifted copies of the
    pooled row; all-zero boundary columns reproduce the conv zero padding.
    """
    w_fold = r * w
    anchor = lambda j: (r - 1) * w + (j + 1) * pw - 1
    sel = np.zeros((w_fold, 3 * w_out), np.float32)
    for j in range(w_out):
        if j >= 1:
            sel[anchor(j - 1), 0 * w_out + j] = 1.0   # tap k=0: pooled[:, j-1]
        sel[anchor(j), 1 * w_out + j] = 1.0           # tap k=1: pooled[:, j]
        if j + 1 < w_out:
            sel[anchor(j + 1), 2 * w_out + j] = 1.0   # tap k=2: pooled[:, j+1]
    return sel


def _roll_max_tree(m, count, unit):
    """After this, lane p holds max over lanes {p - k*unit : 0 <= k < count}."""
    span = 1
    while 2 * span <= count:
        m = jnp.maximum(m, pltpu.roll(m, shift=span * unit, axis=1))
        span *= 2
    if span < count:
        m = jnp.maximum(m, pltpu.roll(m, shift=(count - span) * unit, axis=1))
    return m


def local_forward(x, w1, w2, s1, b1, s2, b2):
    """Eval-mode forward of `local`.

    x : (B, C, H, W) NCHW, W % 20 == 0.
    w1: (3, C1, C)  taps of Conv2d(C, C1, kernel_size=(1,3), padding=(0,1)).
    w2: (C2, C1)    Conv2d(C1, C2, kernel_size=1).
    s1,b1 / s2,b2 : folded BatchNorm scale & bias per channel.
    Returns (B, C2, 1, 20) float32.
    """
    B, C, H, W = x.shape
    assert W % W_OUT == 0, "adaptive pool reproduced exactly only for W % 20 == 0"
    pw = W // W_OUT
    K, C1, Cw = w1.shape
    assert K == 3 and Cw == C
    C2 = w2.shape[0]

    # ---- host-side parameter folding (BN scale into conv weights) ----------
    s1v = jnp.reshape(s1, (C1,)).astype(jnp.float32)
    s2v = jnp.reshape(s2, (C2,)).astype(jnp.float32)
    w1f = w1.astype(jnp.float32) * s1v[None, :, None]          # (3, C1, C)
    w2f = w2.astype(jnp.float32) * s2v[:, None]                # (C2, C1)
    b1c = jnp.reshape(b1, (C1, 1)).astype(jnp.float32)
    b2c = jnp.reshape(b2, (C2, 1)).astype(jnp.float32)

    # ---- lane-density fold: pack r H-rows into the lane axis (free reshape) -
    r = _pick_fold(H, W)
    Hf, Wf = H // r, r * W
    xf = x.reshape(B, C, Hf, Wf)           # contiguous -> no HBM data movement
    sel = jnp.asarray(_build_selection(r, W, pw, W_OUT))       # (Wf, 3*W_OUT)

    # ---- generation-aware H tiling / VMEM budget ----------------------------
    vmem_cap = _vmem_capacity_bytes()
    if vmem_cap >= 100 * 1024 * 1024:        # v5e / v6e : 128 MiB VMEM
        x_block_budget = 16 * 1024 * 1024
        vmem_limit = 96 * 1024 * 1024
    else:                                    # v7x (64 MiB per TC) or unknown
        x_block_budget = 8 * 1024 * 1024
        vmem_limit = 48 * 1024 * 1024

    row_bytes = C * Wf * x.dtype.itemsize
    max_rows = max(8, (x_block_budget // max(row_bytes, 1)) // 8 * 8)
    th = Hf if Hf <= max_rows else max_rows
    nh = -(-Hf // th)
    ragged_h = (Hf % th) != 0
    # Guard: if even a minimum-size block is big (large C*W), raise the limit.
    x_block_bytes = th * row_bytes
    vmem_limit = max(vmem_limit, 3 * x_block_bytes + C * Wf * 4 + (1 << 22))

    def kernel(x_ref, w1_ref, w2_ref, b1_ref, b2_ref, sel_ref, o_ref, hmax_ref):
        h = pl.program_id(1)

        # -------- running max over H (sublane reduce), tiled on grid axis 1 --
        @pl.when(h == 0)
        def _init():
            hmax_ref[...] = jnp.full(hmax_ref.shape, -jnp.inf, jnp.float32)

        if ragged_h:
            # Steady state: unmasked max in the input dtype, cast afterwards.
            @pl.when(h < nh - 1)
            def _steady():
                hmax_ref[...] = jnp.maximum(
                    hmax_ref[...],
                    jnp.max(x_ref[0], axis=1).astype(jnp.float32))

            # Only the last (partial) tile pays for the row mask.
            @pl.when(h == nh - 1)
            def _tail():
                xb = x_ref[0].astype(jnp.float32)
                rows = lax.broadcasted_iota(jnp.int32, xb.shape, 1)
                xb = jnp.where(rows < Hf - (nh - 1) * th, xb, -jnp.inf)
                hmax_ref[...] = jnp.maximum(hmax_ref[...], jnp.max(xb, axis=1))
        else:
            hmax_ref[...] = jnp.maximum(
                hmax_ref[...],
                jnp.max(x_ref[0], axis=1).astype(jnp.float32))

        # -------- last H tile: pool windows + fused conv/BN/ReLU chain -------
        @pl.when(h == nh - 1)
        def _finish():
            m = hmax_ref[...]                               # (C, Wf)
            # Windowed max over each pw-wide lane group (XLU roll max-tree).
            m = _roll_max_tree(m, pw, 1)
            # Combine the r folded H-row blocks (extra shift=W roll steps).
            if r > 1:
                m = _roll_max_tree(m, r, W)

            # One matmul: window compaction + conv tap shifts + zero boundary.
            q = jnp.dot(m, sel_ref[...],
                        preferred_element_type=jnp.float32)  # (C, 3*W_OUT)

            # Conv2d(C, C1, (1,3), padding=(0,1)); BN1 scale pre-folded.
            y = (jnp.dot(w1_ref[0], q[:, 0 * W_OUT:1 * W_OUT],
                         preferred_element_type=jnp.float32)
                 + jnp.dot(w1_ref[1], q[:, 1 * W_OUT:2 * W_OUT],
                           preferred_element_type=jnp.float32)
                 + jnp.dot(w1_ref[2], q[:, 2 * W_OUT:3 * W_OUT],
                           preferred_element_type=jnp.float32))  # (C1, W_OUT)
            y = jnp.maximum(y + b1_ref[...], 0.0)            # BN1 bias + ReLU
            # Dropout2d(0.2): identity in eval mode.
            # Conv2d(C1, C2, 1); BN2 scale pre-folded.
            y = jnp.dot(w2_ref[...], y,
                        preferred_element_type=jnp.float32)  # (C2, W_OUT)
            y = jnp.maximum(y + b2_ref[...], 0.0)            # BN2 bias + ReLU
            o_ref[0] = y.astype(o_ref.dtype)

    cost = pl.CostEstimate(
        flops=int(2 * B * (C * Wf * 3 * W_OUT
                           + 3 * C1 * C * W_OUT + C2 * C1 * W_OUT)),
        transcendentals=0,
        bytes_accessed=int(xf.size * xf.dtype.itemsize + B * C2 * W_OUT * 4),
    )

    out = pl.pallas_call(
        kernel,
        out_shape=jax.ShapeDtypeStruct((B, C2, W_OUT), jnp.float32),
        grid_spec=pltpu.PrefetchScalarGridSpec(
            num_scalar_prefetch=0,
            grid=(B, nh),
            in_specs=[
                pl.BlockSpec((1, C, th, Wf), lambda b, h: (b, 0, h, 0)),
                pl.BlockSpec((3, C1, C), lambda b, h: (0, 0, 0)),
                pl.BlockSpec((C2, C1), lambda b, h: (0, 0)),
                pl.BlockSpec((C1, 1), lambda b, h: (0, 0)),
                pl.BlockSpec((C2, 1), lambda b, h: (0, 0)),
                pl.BlockSpec((Wf, 3 * W_OUT), lambda b, h: (0, 0)),
            ],
            out_specs=pl.BlockSpec((1, C2, W_OUT), lambda b, h: (b, 0, 0)),
            scratch_shapes=[pltpu.VMEM((C, Wf), jnp.float32)],
        ),
        compiler_params=pltpu.CompilerParams(
            dimension_semantics=("parallel", "arbitrary"),
            vmem_limit_bytes=int(vmem_limit),
        ),
        cost_estimate=cost,
    )(xf, w1f, w2f, b1c, b2c, sel)

    return out.reshape(B, C2, 1, W_OUT)


def reference_forward(x, w1, w2, s1, b1, s2, b2):
    """Pure-JAX reference of the same eval-mode forward, for checking."""
    B, C, H, W = x.shape
    pw = W // W_OUT
    pooled = x.reshape(B, C, H, W_OUT, pw).max(axis=(2, 4))          # (B,C,20)
    padded = jnp.pad(pooled, ((0, 0), (0, 0), (1, 1)))
    y = sum(jnp.einsum("oc,bcw->bow", w1[k], padded[:, :, k:k + W_OUT])
            for k in range(3))
    y = jnp.maximum(y * s1.reshape(1, -1, 1) + b1.reshape(1, -1, 1), 0.0)
    y = jnp.einsum("oc,bcw->bow", w2, y)
    y = jnp.maximum(y * s2.reshape(1, -1, 1) + b2.reshape(1, -1, 1), 0.0)
    return y.reshape(B, w2.shape[0], 1, W_OUT)


if __name__ == "__main__":
    dim1, dim2 = 3, 3
    B, H, W = 2, 8, 40          # W multiple of 20 -> uniform adaptive-pool windows

    key = jax.random.PRNGKey(0)
    (kx, k1, k2, kg1, kb1, km1, kv1, kg2, kb2, km2, kv2) = jax.random.split(key, 11)

    x = jax.random.normal(kx, (B, dim1, H, W), dtype=jnp.float32)

    # Conv weights, PyTorch-default-style uniform init (deterministic).
    bound1 = 1.0 / np.sqrt(dim1 * 1 * 3)
    w1 = jax.random.uniform(k1, (3, dim1, dim1), jnp.float32, -bound1, bound1)
    bound2 = 1.0 / np.sqrt(dim1 * 1 * 1)
    w2 = jax.random.uniform(k2, (dim2, dim1), jnp.float32, -bound2, bound2)

    # BatchNorm (eval) with non-trivial params, folded to per-channel scale/bias.
    eps = 1e-5
    gamma1 = jax.random.uniform(kg1, (dim1,), jnp.float32, 0.5, 1.5)
    beta1 = 0.1 * jax.random.normal(kb1, (dim1,), jnp.float32)
    rmean1 = 0.1 * jax.random.normal(km1, (dim1,), jnp.float32)
    rvar1 = jax.random.uniform(kv1, (dim1,), jnp.float32, 0.5, 1.5)
    gamma2 = jax.random.uniform(kg2, (dim2,), jnp.float32, 0.5, 1.5)
    beta2 = 0.1 * jax.random.normal(kb2, (dim2,), jnp.float32)
    rmean2 = 0.1 * jax.random.normal(km2, (dim2,), jnp.float32)
    rvar2 = jax.random.uniform(kv2, (dim2,), jnp.float32, 0.5, 1.5)

    s1 = gamma1 / jnp.sqrt(rvar1 + eps)
    b1 = beta1 - rmean1 * s1
    s2 = gamma2 / jnp.sqrt(rvar2 + eps)
    b2 = beta2 - rmean2 * s2

    out = jax.block_until_ready(local_forward(x, w1, w2, s1, b1, s2, b2))
    ref = jax.block_until_ready(reference_forward(x, w1, w2, s1, b1, s2, b2))
    np.testing.assert_allclose(np.asarray(out), np.asarray(ref),
                               rtol=1e-4, atol=1e-4)

    print("KERNEL_OK")
</pallas_src>

<mosaic_0001>
module attributes {stable_mosaic.version = 11 : i64} {
  func.func @kernel(%arg0: i32, %arg1: i32, %arg2: memref<1x3x2x160xf32, #tpu.memory_space<vmem>>, %arg3: memref<3x3x3xf32, #tpu.memory_space<vmem>>, %arg4: memref<3x3xf32, #tpu.memory_space<vmem>>, %arg5: memref<3x1xf32, #tpu.memory_space<vmem>>, %arg6: memref<3x1xf32, #tpu.memory_space<vmem>>, %arg7: memref<160x60xf32, #tpu.memory_space<vmem>>, %arg8: memref<1x3x20xf32, #tpu.memory_space<vmem>>, %arg9: memref<3x160xf32, #tpu.memory_space<vmem>>) attributes {dimension_semantics = [#tpu.dimension_semantics<parallel>, #tpu.dimension_semantics<arbitrary>], iteration_bounds = array<i64: 2, 1>, scalar_prefetch = 0 : i64, scratch_operands = 1 : i64, tpu.core_type = #tpu.core_type<tc>, window_params = [{transform_indices = @transform_0, window_bounds = array<i64: 1, 3, 2, 160>}, {pipeline_mode = #tpu.pipeline_mode<synchronous>, transform_indices = @transform_1, window_bounds = array<i64: 3, 3, 3>}, {pipeline_mode = #tpu.pipeline_mode<synchronous>, transform_indices = @transform_2, window_bounds = array<i64: 3, 3>}, {pipeline_mode = #tpu.pipeline_mode<synchronous>, transform_indices = @transform_3, window_bounds = array<i64: 3, 1>}, {pipeline_mode = #tpu.pipeline_mode<synchronous>, transform_indices = @transform_4, window_bounds = array<i64: 3, 1>}, {pipeline_mode = #tpu.pipeline_mode<synchronous>, transform_indices = @transform_5, window_bounds = array<i64: 160, 60>}, {transform_indices = @transform_6, window_bounds = array<i64: 1, 3, 20>}]} {
    %c0_i32 = arith.constant 0 : i32
    %0 = arith.cmpi eq, %arg1, %c0_i32 : i32
    %1 = arith.extui %0 : i1 to i32
    %c0_i32_0 = arith.constant 0 : i32
    %2 = arith.cmpi ne, %1, %c0_i32_0 : i32
    scf.if %2 {
      %cst_10 = arith.constant 0xFF800000 : f32
      %12 = vector.broadcast %cst_10 : f32 to vector<3x160xf32>
      %c0_11 = arith.constant 0 : index
      %c0_12 = arith.constant 0 : index
      %13 = vector.load %arg9[%c0_11, %c0_12] : memref<3x160xf32, #tpu.memory_space<vmem>>, vector<3x160xf32>
      tpu.vector_store %arg9[%c0_11, %c0_12], %12 {strides = array<i32>} : memref<3x160xf32, #tpu.memory_space<vmem>>, vector<3x160xf32>,
    } else {
    }
    %c0 = arith.constant 0 : index
    %c0_1 = arith.constant 0 : index
    %3 = vector.load %arg9[%c0, %c0_1] : memref<3x160xf32, #tpu.memory_space<vmem>>, vector<3x160xf32>
    %c0_2 = arith.constant 0 : index
    %c0_3 = arith.constant 0 : index
    %c0_4 = arith.constant 0 : index
    %c0_5 = arith.constant 0 : index
    %4 = vector.load %arg2[%c0_2, %c0_3, %c0_4, %c0_5] : memref<1x3x2x160xf32, #tpu.memory_space<vmem>>, vector<1x3x2x160xf32>
    %5 = vector.shape_cast %4 : vector<1x3x2x160xf32> to vector<3x2x160xf32>
    %cst = arith.constant dense<0xFF800000> : vector<3x160xf32>
    %6 = vector.multi_reduction <maximumf>, %5, %cst [1] : vector<3x2x160xf32> to vector<3x160xf32>
    %7 = arith.maximumf %3, %6 : vector<3x160xf32>
    %c0_6 = arith.constant 0 : index
    %c0_7 = arith.constant 0 : index
    %8 = vector.load %arg9[%c0_6, %c0_7] : memref<3x160xf32, #tpu.memory_space<vmem>>, vector<3x160xf32>
    tpu.vector_store %arg9[%c0_6, %c0_7], %7 {strides = array<i32>} : memref<3x160xf32, #tpu.memory_space<vmem>>, vector<3x160xf32>,
    %c0_i32_8 = arith.constant 0 : i32
    %9 = arith.cmpi eq, %arg1, %c0_i32_8 : i32
    %10 = arith.extui %9 : i1 to i32
    %c0_i32_9 = arith.constant 0 : i32
    %11 = arith.cmpi ne, %10, %c0_i32_9 : i32
    scf.if %11 {
      %c0_10 = arith.constant 0 : index
      %c0_11 = arith.constant 0 : index
      %12 = vector.load %arg9[%c0_10, %c0_11] : memref<3x160xf32, #tpu.memory_space<vmem>>, vector<3x160xf32>
      %c1_i32 = arith.constant 1 : i32
      %13 = tpu.dynamic_rotate %12 by %c1_i32 dim 1 : vector<3x160xf32>, i32 -> vector<3x160xf32>
      %14 = arith.maximumf %12, %13 : vector<3x160xf32>
      %c40_i32 = arith.constant 40 : i32
      %15 = tpu.dynamic_rotate %14 by %c40_i32 dim 1 : vector<3x160xf32>, i32 -> vector<3x160xf32>
      %16 = arith.maximumf %14, %15 : vector<3x160xf32>
      %c80_i32 = arith.constant 80 : i32
      %17 = tpu.dynamic_rotate %16 by %c80_i32 dim 1 : vector<3x160xf32>, i32 -> vector<3x160xf32>
      %18 = arith.maximumf %16, %17 : vector<3x160xf32>
      %c0_12 = arith.constant 0 : index
      %c0_13 = arith.constant 0 : index
      %19 = vector.load %arg7[%c0_12, %c0_13] : memref<160x60xf32, #tpu.memory_space<vmem>>, vector<160x60xf32>
      %cst_14 = arith.constant dense<0.000000e+00> : vector<3x60xf32>
      %20 = tpu.matmul %18, %19, %cst_14 {dimension_numbers = #tpu.dot_dimension_numbers<[1], [0], [0], [1], [0, 0, 1, 1], [], []>} : vector<3x160xf32>, vector<160x60xf32>, vector<3x60xf32> -> vector<3x60xf32>
      %c0_15 = arith.constant 0 : index
      %c0_16 = arith.constant 0 : index
      %c0_17 = arith.constant 0 : index
      %21 = vector.load %arg3[%c0_15, %c0_16, %c0_17] : memref<3x3x3xf32, #tpu.memory_space<vmem>>, vector<1x3x3xf32>
      %22 = vector.shape_cast %21 : vector<1x3x3xf32> to vector<3x3xf32>
      %23 = vector.extract_strided_slice %20 {offsets = [0, 0], sizes = [3, 20], strides = [1, 1]} : vector<3x60xf32> to vector<3x20xf32>
      %cst_18 = arith.constant dense<0.000000e+00> : vector<3x20xf32>
      %24 = tpu.matmul %22, %23, %cst_18 {dimension_numbers = #tpu.dot_dimension_numbers<[1], [0], [0], [1], [0, 0, 1, 1], [], []>} : vector<3x3xf32>, vector<3x20xf32>, vector<3x20xf32> -> vector<3x20xf32>
      %c1 = arith.constant 1 : index
      %c0_19 = arith.constant 0 : index
      %c0_20 = arith.constant 0 : index
      %25 = vector.load %arg3[%c1, %c0_19, %c0_20] : memref<3x3x3xf32, #tpu.memory_space<vmem>>, vector<1x3x3xf32>
      %26 = vector.shape_cast %25 : vector<1x3x3xf32> to vector<3x3xf32>
      %27 = vector.extract_strided_slice %20 {offsets = [0, 20], sizes = [3, 20], strides = [1, 1]} : vector<3x60xf32> to vector<3x20xf32>
      %cst_21 = arith.constant dense<0.000000e+00> : vector<3x20xf32>
      %28 = tpu.matmul %26, %27, %cst_21 {dimension_numbers = #tpu.dot_dimension_numbers<[1], [0], [0], [1], [0, 0, 1, 1], [], []>} : vector<3x3xf32>, vector<3x20xf32>, vector<3x20xf32> -> vector<3x20xf32>
      %29 = arith.addf %24, %28 : vector<3x20xf32>
      %c2 = arith.constant 2 : index
      %c0_22 = arith.constant 0 : index
      %c0_23 = arith.constant 0 : index
      %30 = vector.load %arg3[%c2, %c0_22, %c0_23] : memref<3x3x3xf32, #tpu.memory_space<vmem>>, vector<1x3x3xf32>
      %31 = vector.shape_cast %30 : vector<1x3x3xf32> to vector<3x3xf32>
      %32 = vector.extract_strided_slice %20 {offsets = [0, 40], sizes = [3, 20], strides = [1, 1]} : vector<3x60xf32> to vector<3x20xf32>
      %cst_24 = arith.constant dense<0.000000e+00> : vector<3x20xf32>
      %33 = tpu.matmul %31, %32, %cst_24 {dimension_numbers = #tpu.dot_dimension_numbers<[1], [0], [0], [1], [0, 0, 1, 1], [], []>} : vector<3x3xf32>, vector<3x20xf32>, vector<3x20xf32> -> vector<3x20xf32>
      %34 = arith.addf %29, %33 : vector<3x20xf32>
      %c0_25 = arith.constant 0 : index
      %c0_26 = arith.constant 0 : index
      %35 = vector.load %arg5[%c0_25, %c0_26] : memref<3x1xf32, #tpu.memory_space<vmem>>, vector<3x1xf32>
      %36 = vector.broadcast %35 : vector<3x1xf32> to vector<3x20xf32>
      %37 = arith.addf %34, %36 : vector<3x20xf32>
      %cst_27 = arith.constant 0.000000e+00 : f32
      %38 = vector.broadcast %cst_27 : f32 to vector<3x20xf32>
      %39 = arith.maximumf %37, %38 : vector<3x20xf32>
      %c0_28 = arith.constant 0 : index
      %c0_29 = arith.constant 0 : index
      %40 = vector.load %arg4[%c0_28, %c0_29] : memref<3x3xf32, #tpu.memory_space<vmem>>, vector<3x3xf32>
      %cst_30 = arith.constant dense<0.000000e+00> : vector<3x20xf32>
      %41 = tpu.matmul %40, %39, %cst_30 {dimension_numbers = #tpu.dot_dimension_numbers<[1], [0], [0], [1], [0, 0, 1, 1], [], []>} : vector<3x3xf32>, vector<3x20xf32>, vector<3x20xf32> -> vector<3x20xf32>
      %c0_31 = arith.constant 0 : index
      %c0_32 = arith.constant 0 : index
      %42 = vector.load %arg6[%c0_31, %c0_32] : memref<3x1xf32, #tpu.memory_space<vmem>>, vector<3x1xf32>
      %43 = vector.broadcast %42 : vector<3x1xf32> to vector<3x20xf32>
      %44 = arith.addf %41, %43 : vector<3x20xf32>
      %cst_33 = arith.constant 0.000000e+00 : f32
      %45 = vector.broadcast %cst_33 : f32 to vector<3x20xf32>
      %46 = arith.maximumf %44, %45 : vector<3x20xf32>
      %c0_34 = arith.constant 0 : index
      %c0_35 = arith.constant 0 : index
      %c0_36 = arith.constant 0 : index
      %47 = vector.load %arg8[%c0_34, %c0_35, %c0_36] : memref<1x3x20xf32, #tpu.memory_space<vmem>>, vector<1x3x20xf32>
      %48 = vector.shape_cast %47 : vector<1x3x20xf32> to vector<3x20xf32>
      %49 = vector.shape_cast %46 : vector<3x20xf32> to vector<1x3x20xf32>
      tpu.vector_store %arg8[%c0_34, %c0_35, %c0_36], %49 {strides = array<i32>} : memref<1x3x20xf32, #tpu.memory_space<vmem>>, vector<1x3x20xf32>,
    } else {
    }
    return
  }
  func.func @transform_0(%arg0: i32, %arg1: i32) -> (i32, i32, i32, i32) {
    %c0_i32 = arith.constant 0 : i32
    %c0_i32_0 = arith.constant 0 : i32
    %c0_i32_1 = arith.constant 0 : i32
    return %arg0, %c0_i32, %arg1, %c0_i32_0 : i32, i32, i32, i32
  }
  func.func @transform_1(%arg0: i32, %arg1: i32) -> (i32, i32, i32) {
    %c0_i32 = arith.constant 0 : i32
    %c0_i32_0 = arith.constant 0 : i32
    %c0_i32_1 = arith.constant 0 : i32
    %c0_i32_2 = arith.constant 0 : i32
    return %c0_i32, %c0_i32_0, %c0_i32_1 : i32, i32, i32
  }
  func.func @transform_2(%arg0: i32, %arg1: i32) -> (i32, i32) {
    %c0_i32 = arith.constant 0 : i32
    %c0_i32_0 = arith.constant 0 : i32
    %c0_i32_1 = arith.constant 0 : i32
    return %c0_i32, %c0_i32_0 : i32, i32
  }
  func.func @transform_3(%arg0: i32, %arg1: i32) -> (i32, i32) {
    %c0_i32 = arith.constant 0 : i32
    %c0_i32_0 = arith.constant 0 : i32
    %c0_i32_1 = arith.constant 0 : i32
    return %c0_i32, %c0_i32_0 : i32, i32
  }
  func.func @transform_4(%arg0: i32, %arg1: i32) -> (i32, i32) {
    %c0_i32 = arith.constant 0 : i32
    %c0_i32_0 = arith.constant 0 : i32
    %c0_i32_1 = arith.constant 0 : i32
    return %c0_i32, %c0_i32_0 : i32, i32
  }
  func.func @transform_5(%arg0: i32, %arg1: i32) -> (i32, i32) {
    %c0_i32 = arith.constant 0 : i32
    %c0_i32_0 = arith.constant 0 : i32
    %c0_i32_1 = arith.constant 0 : i32
    return %c0_i32, %c0_i32_0 : i32, i32
  }
  func.func @transform_6(%arg0: i32, %arg1: i32) -> (i32, i32, i32) {
    %c0_i32 = arith.constant 0 : i32
    %c0_i32_0 = arith.constant 0 : i32
    %c0_i32_1 = arith.constant 0 : i32
    return %arg0, %c0_i32, %c0_i32_0 : i32, i32, i32
  }
}

</mosaic_0001>

<llo_original>
// kernel: tpu_custom_call.1
$region0: #{tpu_custom_call.1}
  #allocation0 [shape = 'u32[]', space=smem, size = 0x4, offset = 0x4, fixed_abs, tag = 'smem constant byte address 0x4 - core index']
  #allocation1 [shape = 'u32[144,128]{1,0:T(1,128)}', space=vmem, size = 0x12000, scoped, tag = 'internal scratch']
  #allocation2 [shape = 'f32[3,160]{1,0:T(4,128)}', space=vmem, size = 0x1000, scoped, tag = 'scratch operand']
  %s0 = inlined_call_operand.vmem [shape: f32[2,3,2,160], index: 0, kind: input, shape index: {}]
  %s1 = inlined_call_operand.vmem [shape: f32[3,3,3], index: 1, kind: input, shape index: {}]
  %s2 = inlined_call_operand.vmem [shape: f32[3,3], index: 2, kind: input, shape index: {}]
  %s3 = inlined_call_operand.vmem [shape: f32[3,1], index: 3, kind: input, shape index: {}]
  %s4 = inlined_call_operand.vmem [shape: f32[3,1], index: 4, kind: input, shape index: {}]
  %s5 = inlined_call_operand.vmem [shape: f32[160,60], index: 5, kind: input, shape index: {}]
  %s6 = inlined_call_operand.vmem [shape: f32[2,3,20], index: 6, kind: output, shape index: {}]
  %s7 = sld [smem:[#allocation0]]
  $region65: #{tpu_custom_call.1} parent=0
    _
  %s9 = ssub.s32 1, %s7
  %s10 = scalar_select 0, %s9, %s7
  loop: start=0, step=1, limit=4
  $region2: #{tpu_custom_call.1} parent=0 // loop_pre_header
    _
  $region3: #{tpu_custom_call.1} parent=0 // loop_header
    %s12 = sphi 0, %s16
    %p13 = scmp.ge.s32.totalorder %s12, 4
    %s19 = sphi 0, %s31
    %s20 = sphi 0, %s27
    %s21 = sphi 0, %s19
    %s22 = sphi 0, %s20
    %s23 = sphi 0, %s21
    %s24 = sphi 0, %s22
    %s36 = sphi 0, %s38
    %s39 = sphi 0, %s36
    %s40 = sphi 0, %s39
    %s56 = sphi 0, %s40
    %s60 = sphi 0, %s60
    %s62 = sphi 0, %s60
    %s63 = sphi 0, %s62
    %s77 = sphi 0, %s63
    %s81 = sphi 0, %s81
    %s83 = sphi 0, %s81
    %s84 = sphi 0, %s83
    %s98 = sphi 0, %s84
    %s102 = sphi 0, %s102
    %s104 = sphi 0, %s102
    %s105 = sphi 0, %s104
    %s119 = sphi 0, %s105
    %s123 = sphi 0, %s123
    %s125 = sphi 0, %s123
    %s126 = sphi 0, %s125
    %s140 = sphi 0, %s126
    %s144 = sphi 0, %s144
    %s146 = sphi 0, %s144
    %s147 = sphi 0, %s146
    %s161 = sphi 0, %s147
    %s167 = sphi 0, %s169
    %s170 = sphi 0, %s167
    %s171 = sphi 0, %s170
    %s187 = sphi 0, %s171
  $region4: #{tpu_custom_call.1} parent=0 // loop_header_branch
    %15 = sbr.rel (%p13) target = $region8
  $region5: #{tpu_custom_call.1} parent=0 // loop_body
    %s17 = ssub.s32 %s12, 1
    %s18 = ssub.s32 %s12, 2
    %s25 = sadd.s32 1, %s20
    %p26 = scmp.ge.s32.totalorder %s25, 1
    %s27 = scalar_select %p26, 0, %s25
    %s28 = sadd.s32 1, %s19
    %s29 = scalar_select %p26, %s28, %s19
    %p30 = scmp.ge.s32.totalorder %s29, 2
    %s31 = scalar_select %p30, 0, %s29
    %s32 = ssub.s32 %s19, %s31
    %s33 = ssub.s32 %s20, %s27
    %s34 = sor.u32 %s32, %s33
    %p35 = scmp.eq.s32.totalorder %s34, 0
    %s37 = sadd.s32 %s36, 1
    %s38 = scalar_select %p35, %s36, %s37
    %p41 = pneg %p35
    %p42 = scmp.eq.s32.totalorder %s12, 1
    %p43 = por %p41, %p42
    %p44 = scmp.ne.s32.totalorder %s36, %s39
    %p45 = scmp.eq.s32.totalorder %s12, 0
    %p46 = por %p44, %p45
    %p47 = scmp.ne.s32.totalorder %s36, %s39
    %p48 = scmp.eq.s32.totalorder %s17, 1
    %p49 = por %p47, %p48
    %p50 = scmp.ne.s32.totalorder %s39, %s40
    %p51 = scmp.eq.s32.totalorder %s17, 0
    %p52 = por %p50, %p51
    %p53 = scmp.ne.s32.totalorder %s39, %s40
    %p54 = scmp.eq.s32.totalorder %s18, 1
    %p55 = por %p53, %p54
    %p57 = scmp.ne.s32.totalorder %s40, %s56
    %p58 = scmp.eq.s32.totalorder %s18, 0
    %p59 = por %p57, %p58
    %s61 = sadd.s32 %s60, 1
    %p64 = scmp.eq.s32.totalorder %s12, 1
    %p65 = scmp.ne.s32.totalorder %s60, %s62
    %p66 = scmp.eq.s32.totalorder %s12, 0
    %p67 = por %p65, %p66
    %p68 = scmp.ne.s32.totalorder %s60, %s62
    %p69 = scmp.eq.s32.totalorder %s17, 1
    %p70 = por %p68, %p69
    %p71 = scmp.ne.s32.totalorder %s62, %s63
    %p72 = scmp.eq.s32.totalorder %s17, 0
    %p73 = por %p71, %p72
    %p74 = scmp.ne.s32.totalorder %s62, %s63
    %p75 = scmp.eq.s32.totalorder %s18, 1
    %p76 = por %p74, %p75
    %p78 = scmp.ne.s32.totalorder %s63, %s77
    %p79 = scmp.eq.s32.totalorder %s18, 0
    %p80 = por %p78, %p79
    %s82 = sadd.s32 %s81, 1
    %p85 = scmp.eq.s32.totalorder %s12, 1
    %p86 = scmp.ne.s32.totalorder %s81, %s83
    %p87 = scmp.eq.s32.totalorder %s12, 0
    %p88 = por %p86, %p87
    %p89 = scmp.ne.s32.totalorder %s81, %s83
    %p90 = scmp.eq.s32.totalorder %s17, 1
    %p91 = por %p89, %p90
    %p92 = scmp.ne.s32.totalorder %s83, %s84
    %p93 = scmp.eq.s32.totalorder %s17, 0
    %p94 = por %p92, %p93
    %p95 = scmp.ne.s32.totalorder %s83, %s84
    %p96 = scmp.eq.s32.totalorder %s18, 1
    %p97 = por %p95, %p96
    %p99 = scmp.ne.s32.totalorder %s84, %s98
    %p100 = scmp.eq.s32.totalorder %s18, 0
    %p101 = por %p99, %p100
    %s103 = sadd.s32 %s102, 1
    %p106 = scmp.eq.s32.totalorder %s12, 1
    %p107 = scmp.ne.s32.totalorder %s102, %s104
    %p108 = scmp.eq.s32.totalorder %s12, 0
    %p109 = por %p107, %p108
    %p110 = scmp.ne.s32.totalorder %s102, %s104
    %p111 = scmp.eq.s32.totalorder %s17, 1
    %p112 = por %p110, %p111
    %p113 = scmp.ne.s32.totalorder %s104, %s105
    %p114 = scmp.eq.s32.totalorder %s17, 0
    %p115 = por %p113, %p114
    %p116 = scmp.ne.s32.totalorder %s104, %s105
    %p117 = scmp.eq.s32.totalorder %s18, 1
    %p118 = por %p116, %p117
    %p120 = scmp.ne.s32.totalorder %s105, %s119
    %p121 = scmp.eq.s32.totalorder %s18, 0
    %p122 = por %p120, %p121
    %s124 = sadd.s32 %s123, 1
    %p127 = scmp.eq.s32.totalorder %s12, 1
    %p128 = scmp.ne.s32.totalorder %s123, %s125
    %p129 = scmp.eq.s32.totalorder %s12, 0
    %p130 = por %p128, %p129
    %p131 = scmp.ne.s32.totalorder %s123, %s125
    %p132 = scmp.eq.s32.totalorder %s17, 1
    %p133 = por %p131, %p132
    %p134 = scmp.ne.s32.totalorder %s125, %s126
    %p135 = scmp.eq.s32.totalorder %s17, 0
    %p136 = por %p134, %p135
    %p137 = scmp.ne.s32.totalorder %s125, %s126
    %p138 = scmp.eq.s32.totalorder %s18, 1
    %p139 = por %p137, %p138
    %p141 = scmp.ne.s32.totalorder %s126, %s140
    %p142 = scmp.eq.s32.totalorder %s18, 0
    %p143 = por %p141, %p142
    %s145 = sadd.s32 %s144, 1
    %p148 = scmp.eq.s32.totalorder %s12, 1
    %p149 = scmp.ne.s32.totalorder %s144, %s146
    %p150 = scmp.eq.s32.totalorder %s12, 0
    %p151 = por %p149, %p150
    %p152 = scmp.ne.s32.totalorder %s144, %s146
    %p153 = scmp.eq.s32.totalorder %s17, 1
    %p154 = por %p152, %p153
    %p155 = scmp.ne.s32.totalorder %s146, %s147
    %p156 = scmp.eq.s32.totalorder %s17, 0
    %p157 = por %p155, %p156
    %p158 = scmp.ne.s32.totalorder %s146, %s147
    %p159 = scmp.eq.s32.totalorder %s18, 1
    %p160 = por %p158, %p159
    %p162 = scmp.ne.s32.totalorder %s147, %s161
    %p163 = scmp.eq.s32.totalorder %s18, 0
    %p164 = por %p162, %p163
    %s165 = ssub.s32 %s19, %s31
    %p166 = scmp.eq.s32.totalorder %s165, 0
    %s168 = sadd.s32 %s167, 1
    %s169 = scalar_select %p166, %s167, %s168
    %p172 = pneg %p166
    %p173 = scmp.eq.s32.totalorder %s12, 1
    %p174 = por %p172, %p173
    %p175 = scmp.ne.s32.totalorder %s167, %s170
    %p176 = scmp.eq.s32.totalorder %s12, 0
    %p177 = por %p175, %p176
    %p178 = scmp.ne.s32.totalorder %s167, %s170
    %p179 = scmp.eq.s32.totalorder %s17, 1
    %p180 = por %p178, %p179
    %p181 = scmp.ne.s32.totalorder %s170, %s171
    %p182 = scmp.eq.s32.totalorder %s17, 0
    %p183 = por %p181, %p182
    %p184 = scmp.ne.s32.totalorder %s170, %s171
    %p185 = scmp.eq.s32.totalorder %s18, 1
    %p186 = por %p184, %p185
    %p188 = scmp.ne.s32.totalorder %s171, %s187
    %p189 = scmp.eq.s32.totalorder %s18, 0
    %p190 = por %p188, %p189
    %p191 = scmp.le.s32.totalorder 1, %s12
    %p192 = scmp.lt.s32.totalorder %s12, 3
    %p193 = pnand %p191, %p192
    %p194 = pneg %p193
    // Predicated region
    $region9: #{tpu_custom_call.1} parent=5 // pred_check
      _
    $region10: #{tpu_custom_call.1} parent=5 // pred_check_branch
      %196 = sbr.rel (%p193) target = $region12
    $region11: #{tpu_custom_call.1} parent=5 // pred_region
      %s197 = ssub.s32 %s12, 1
      // Predicated region
      $region13: #{tpu_custom_call.1} parent=11 // pred_check
        %p198 = pneg %p73
      $region14: #{tpu_custom_call.1} parent=11 // pred_check_branch
        %200 = sbr.rel (%p198) target = $region16
      $region15: #{tpu_custom_call.1} parent=11 // pred_region
        _
      $region16: #{tpu_custom_call.1} parent=11 // pred_fallthru
        _
      // Predicated region
      $region17: #{tpu_custom_call.1} parent=11 // pred_check
        %p201 = pneg %p94
      $region18: #{tpu_custom_call.1} parent=11 // pred_check_branch
        %203 = sbr.rel (%p201) target = $region20
      $region19: #{tpu_custom_call.1} parent=11 // pred_region
        _
      $region20: #{tpu_custom_call.1} parent=11 // pred_fallthru
        _
      // Predicated region
      $region21: #{tpu_custom_call.1} parent=11 // pred_check
        %p204 = pneg %p115
      $region22: #{tpu_custom_call.1} parent=11 // pred_check_branch
        %206 = sbr.rel (%p204) target = $region24
      $region23: #{tpu_custom_call.1} parent=11 // pred_region
        _
      $region24: #{tpu_custom_call.1} parent=11 // pred_fallthru
        _
      // Predicated region
      $region25: #{tpu_custom_call.1} parent=11 // pred_check
        %p207 = pneg %p136
      $region26: #{tpu_custom_call.1} parent=11 // pred_check_branch
        %209 = sbr.rel (%p207) target = $region28
      $region27: #{tpu_custom_call.1} parent=11 // pred_region
        _
      $region28: #{tpu_custom_call.1} parent=11 // pred_fallthru
        _
      // Predicated region
      $region29: #{tpu_custom_call.1} parent=11 // pred_check
        %p210 = pneg %p157
      $region30: #{tpu_custom_call.1} parent=11 // pred_check_branch
        %212 = sbr.rel (%p210) target = $region32
      $region31: #{tpu_custom_call.1} parent=11 // pred_region
        _
      $region32: #{tpu_custom_call.1} parent=11 // pred_fallthru
        _
    $region12: #{tpu_custom_call.1} parent=5 // pred_fallthru
      _
    %p213 = scmp.lt.s32.totalorder %s12, 2
    // Predicated region
    $region33: #{tpu_custom_call.1} parent=5 // pred_check
      %p214 = pneg %p213
    $region34: #{tpu_custom_call.1} parent=5 // pred_check_branch
      %216 = sbr.rel (%p214) target = $region36
    $region35: #{tpu_custom_call.1} parent=5 // pred_region
      // Predicated region
      $region37: #{tpu_custom_call.1} parent=35 // pred_check
        %p217 = pneg %p46
      $region38: #{tpu_custom_call.1} parent=35 // pred_check_branch
        %219 = sbr.rel (%p217) target = $region40
      $region39: #{tpu_custom_call.1} parent=35 // pred_region
        %p220 = scmp.lt.s32.totalorder %s19, 1
        %s221 = scalar_select %p220, %s19, 1
        %p222 = scmp.lt.s32.totalorder %s20, 0
        %s223 = scalar_select %p222, %s20, 0
        %s224 = smul.addr %s223, 2
        %s225 = smul.addr %s221, 6
        %s226 = sadd.s32 %s224, %s225
        %s227 = smul.addr %s226, 2
        %s228 = scalar_lea.vmem %s0, %s227
      $region40: #{tpu_custom_call.1} parent=35 // pred_fallthru
        _
    $region36: #{tpu_custom_call.1} parent=5 // pred_fallthru
      _
    %p229 = scmp.le.s32.totalorder 1, %s12
    %p230 = scmp.lt.s32.totalorder %s12, 3
    %p231 = pnand %p229, %p230
    %p232 = pneg %p231
    // Predicated region
    $region41: #{tpu_custom_call.1} parent=5 // pred_check
      _
    $region42: #{tpu_custom_call.1} parent=5 // pred_check_branch
      %234 = sbr.rel (%p231) target = $region44
    $region43: #{tpu_custom_call.1} parent=5 // pred_region
      %s235 = ssub.s32 %s12, 1
      %p236 = scmp.lt.s32.totalorder %s21, 1
      %s237 = scalar_select %p236, %s21, 1
      %p238 = scmp.lt.s32.totalorder %s22, 0
      %s239 = scalar_select %p238, %s22, 0
      %s240 = smul.addr %s239, 2
      %s241 = smul.addr %s237, 6
      %s242 = sadd.s32 %s240, %s241
      %s243 = smul.addr %s242, 2
      %s244 = scalar_lea.vmem %s0, %s243
      %p245 = pneg %p52
      %p246 = pneg %p49
      %p247 = pneg %p73
      %p248 = pneg %p70
      %p249 = pneg %p94
      %p250 = pneg %p91
      %p251 = pneg %p115
      %p252 = pneg %p112
      %p253 = pneg %p136
      %p254 = pneg %p133
      %p255 = pneg %p157
      %p256 = pneg %p154
      %p257 = pneg %p183
      %p258 = pneg %p180
      %p259 = scmp.lt.s32.totalorder %s21, 1
      %s260 = scalar_select %p259, %s21, 1
      %s261 = smul.addr %s260, 4
      %s262 = scalar_lea.vmem %s6, %s261
      %p263 = scmp.lt.s32.totalorder %s21, 1
      %s264 = scalar_select %p263, %s21, 1
      %p265 = scmp.lt.s32.totalorder %s22, 0
      %s266 = scalar_select %p265, %s22, 0
      %s267 = smul.addr %s266, 2
      %s268 = smul.addr %s264, 6
      %s269 = sadd.s32 %s267, %s268
      %s270 = smul.addr %s269, 2
      %s271 = scalar_lea.vmem %s0, %s270
      %p272 = scmp.lt.s32.totalorder %s21, 1
      %s273 = scalar_select %p272, %s21, 1
      %s274 = smul.addr %s273, 4
      %s275 = scalar_lea.vmem %s6, %s274
      %p276 = scmp.eq.s32.totalorder %s22, 0
      // Predicated region
      $region45: #{tpu_custom_call.1} parent=43 // pred_check
        %p277 = pneg %p276
      $region46: #{tpu_custom_call.1} parent=43 // pred_check_branch
        %279 = sbr.rel (%p277) target = $region48
      $region47: #{tpu_custom_call.1} parent=43 // pred_region
        %vm280 = vcmask 1042432
        %vm281 = vcmask 260100
        %vm282 = vmor %vm281, %vm280
        %283 = vst.msk [vmem:[#allocation2] sm:$0x77] %vm282, -inf
      $region48: #{tpu_custom_call.1} parent=43 // pred_fallthru
        _
      %v284 = vld [vmem:[#allocation2] sm:$0x77]
      %v285 = vld [vmem:[%s271] sm:$0xf]
      %v286 = vld [vmem:[%s271 + $0x4] sm:$0xf]
      %v287 = vld [vmem:[%s271 + $0x8] sm:$0xf]
      %v292 = vunpack.c.l.s4 1983009808
      %v293 = vunpack.c.0.s8 %v292
      %v294 = vlaneseq
      %v295 = vshrl.u32 %v294, 7
      %v296 = vsub.s32 %v293, %v295
      %v297 = vrot.slane %v285, %v296
      %v298 = vcombine.high %v297, %v297
      %v300 = vunpack.c.l.s4 1983009808
      %v301 = vunpack.c.0.s8 %v300
      %v302 = vlaneseq
      %v303 = vshrl.u32 %v302, 7
      %v304 = vsub.s32 %v301, %v303
      %v305 = vrot.slane %v286, %v304
      %v306 = vcombine.high %v305, %v305
      %v308 = vunpack.c.l.s4 1983009808
      %v309 = vunpack.c.0.s8 %v308
      %v310 = vlaneseq
      %v311 = vshrl.u32 %v310, 7
      %v312 = vsub.s32 %v309, %v311
      %v313 = vrot.slane %v287, %v312
      %v314 = vcombine.high %v313, %v313
      %vm321 = vcmask 1041408
      %v322 = vsel %vm321, %v297, -inf
      %v323 = vrot.slane %v322, 4
      %v324 = vmax.f32 %v322, %v323
      %v325 = vrot.slane %v324, 2
      %v326 = vmax.f32 %v324, %v325
      %v327 = vrot.slane %v326, 1
      %v328 = vmax.f32 %v326, %v327
      %vm329 = vcmask 254976
      %v330 = vsel %vm329, %v298, -inf
      %v331 = vrot.slane %v330, 4
      %v332 = vmax.f32 %v330, %v331
      %v333 = vrot.slane %v332, 2
      %v334 = vmax.f32 %v332, %v333
      %v335 = vrot.slane %v334, 1
      %v336 = vmax.f32 %v334, %v335
      %v337 = vsel %vm321, %v305, -inf
      %v338 = vrot.slane %v337, 4
      %v339 = vmax.f32 %v337, %v338
      %v340 = vrot.slane %v339, 2
      %v341 = vmax.f32 %v339, %v340
      %v342 = vrot.slane %v341, 1
      %v343 = vmax.f32 %v341, %v342
      %v344 = vsel %vm329, %v306, -inf
      %v345 = vrot.slane %v344, 4
      %v346 = vmax.f32 %v344, %v345
      %v347 = vrot.slane %v346, 2
      %v348 = vmax.f32 %v346, %v347
      %v349 = vrot.slane %v348, 1
      %v350 = vmax.f32 %v348, %v349
      %v351 = vsel %vm321, %v313, -inf
      %v352 = vrot.slane %v351, 4
      %v353 = vmax.f32 %v351, %v352
      %v354 = vrot.slane %v353, 2
      %v355 = vmax.f32 %v353, %v354
      %v356 = vrot.slane %v355, 1
      %v357 = vmax.f32 %v355, %v356
      %v358 = vsel %vm329, %v314, -inf
      %v359 = vrot.slane %v358, 4
      %v360 = vmax.f32 %v358, %v359
      %v361 = vrot.slane %v360, 2
      %v362 = vmax.f32 %v360, %v361
      %v363 = vrot.slane %v362, 1
      %v364 = vmax.f32 %v362, %v363
      %v371 = vcombine.low %v328, %v336
      %v372 = vcombine.low %v343, %v350
      %v373 = vcombine.low %v357, %v364
      %v374 = vrot.slane %v372, 7
      %vm375 = vcmask 1041409
      %v376 = vsel %vm375, %v374, %v371
      %vm377 = vcmask 1045509
      %v378 = vsel %vm377, %v374, %v376
      %v379 = vrot.slane %v373, 6
      %vm380 = vcmask 1042434
      %v381 = vsel %vm380, %v379, %v378
      %vm382 = vcmask 1046534
      %v383 = vsel %vm382, %v379, %v381
      %v385 = vmax.f32 %v284, %v383
      %vm386 = vcmask 1042432
      %vm387 = vcmask 260100
      %vm388 = vmor %vm387, %vm386
      %389 = vst.msk [vmem:[#allocation2] sm:$0x77] %vm388, %v385
      // Predicated region
      $region49: #{tpu_custom_call.1} parent=43 // pred_check
        %p390 = pneg %p276
      $region50: #{tpu_custom_call.1} parent=43 // pred_check_branch
        %392 = sbr.rel (%p390) target = $region52
      $region51: #{tpu_custom_call.1} parent=43 // pred_region
        %v393 = vld [vmem:[#allocation2] sm:$0x77]
        %v395 = vcombine.high %v393, %v393
        %vm397 = vcmask 1047808
        %398 = vrot.lane.b32.xlu0 %v393, 32
        %v399 = vpop.permute.xlu0 %398
        %v400 = vsel %vm397, %v399, %v395
        %401 = vrot.lane.b32.xlu0 %v400, 32
        %v402 = vpop.permute.xlu0 %401
        %v403 = vsel %vm397, %v402, %v399
        %v406 = vcombine.low %v400, %v403
        %407 = vrot.lane.b32.xlu0 %v406, 97
        %v408 = vpop.permute.xlu0 %407
        %v409 = vrot.slane %v408, 4
        %vm410 = vcmask 793600
        %v411 = vsel %vm410, %v408, %v409
        %v413 = vmax.f32 %v393, %v411
        %v415 = vcombine.high %v413, %v413
        %417 = vrot.lane.b32.xlu0 %v413, 32
        %v418 = vpop.permute.xlu0 %417
        %v419 = vsel %vm397, %v418, %v415
        %420 = vrot.lane.b32.xlu0 %v419, 32
        %v421 = vpop.permute.xlu0 %420
        %v422 = vsel %vm397, %v421, %v418
        %v425 = vcombine.low %v413, %v419
        %426 = vrot.lane.b32.xlu0 %v425, 8
        %v427 = vpop.permute.xlu0 %426
        %428 = vrot.lane.b32.xlu0 %v422, 8
        %v429 = vpop.permute.xlu0 %428
        %v430 = vrot.slane %v427, 4
        %v431 = vrot.slane %v429, 4
        %vm432 = vcmask 1043456
        %v433 = vsel %vm432, %v430, %v431
        %vm434 = vcmask 64512
        %v435 = vsel %vm434, %v427, %v433
        %v437 = vmax.f32 %v413, %v435
        %v439 = vcombine.high %v437, %v437
        %441 = vrot.lane.b32.xlu0 %v437, 32
        %v442 = vpop.permute.xlu0 %441
        %v443 = vsel %vm397, %v442, %v439
        %v445 = vcombine.low %v437, %v443
        %446 = vrot.lane.b32.xlu0 %v445, 48
        %v447 = vpop.permute.xlu0 %446
        %v448 = vrot.slane %v447, 4
        %vm449 = vcmask 392192
        %v450 = vsel %vm449, %v447, %v448
        %v452 = vmax.f32 %v437, %v450
        %v453 = vld [vmem:[%s5] sm:$0xff]
        %v454 = vld [vmem:[%s5 + $0x8] sm:$0xff]
        %v455 = vld [vmem:[%s5 + $0x10] sm:$0xff]
        %v456 = vld [vmem:[%s5 + $0x18] sm:$0xff]
        %v457 = vld [vmem:[%s5 + $0x20] sm:$0xff]
        %v458 = vld [vmem:[%s5 + $0x28] sm:$0xff]
        %v459 = vld [vmem:[%s5 + $0x30] sm:$0xff]
        %v460 = vld [vmem:[%s5 + $0x38] sm:$0xff]
        %v461 = vld [vmem:[%s5 + $0x40] sm:$0xff]
        %v462 = vld [vmem:[%s5 + $0x48] sm:$0xff]
        %v463 = vld [vmem:[%s5 + $0x50] sm:$0xff]
        %v464 = vld [vmem:[%s5 + $0x58] sm:$0xff]
        %v465 = vld [vmem:[%s5 + $0x60] sm:$0xff]
        %v466 = vld [vmem:[%s5 + $0x68] sm:$0xff]
        %v467 = vld [vmem:[%s5 + $0x70] sm:$0xff]
        %v468 = vld [vmem:[%s5 + $0x78] sm:$0xff]
        %v469 = vld [vmem:[%s5 + $0x80] sm:$0xff]
        %v470 = vld [vmem:[%s5 + $0x88] sm:$0xff]
        %v471 = vld [vmem:[%s5 + $0x90] sm:$0xff]
        %v472 = vld [vmem:[%s5 + $0x98] sm:$0xff]
        %v474 = vcombine.high %v452, %v452
        %vm475 = vcmask 261120
        %v476 = vsel %vm475, %v474, 0
        %478 = vmatprep.subr.mxu0 0.0
        %479 = vmatpush1.msra.mxu0 %v453
        %480 = vmatprep.subr.mxu0 0.0
        %481 = vmatpush1.msra.mxu0 %v454
        %482 = vmatprep.subr.mxu0 0.0
        %483 = vmatpush1.msra.mxu0 %v455
        %484 = vmatprep.subr.mxu0 0.0
        %485 = vmatpush1.msra.mxu0 %v456
        %486 = vmatprep.subr.mxu0 0.0
        %487 = vmatpush1.msra.mxu0 %v457
        %488 = vmatprep.subr.mxu0 0.0
        %489 = vmatpush1.msra.mxu0 %v458
        %490 = vmatprep.subr.mxu0 0.0
        %491 = vmatpush1.msra.mxu0 %v459
        %492 = vmatprep.subr.mxu0 0.0
        %493 = vmatpush1.msra.mxu0 %v460
        %494 = vmatprep.subr.mxu0 0.0
        %495 = vmatpush1.msra.mxu0 %v461
        %496 = vmatprep.subr.mxu0 0.0
        %497 = vmatpush1.msra.mxu0 %v462
        %498 = vmatprep.subr.mxu0 0.0
        %499 = vmatpush1.msra.mxu0 %v463
        %500 = vmatprep.subr.mxu0 0.0
        %501 = vmatpush1.msra.mxu0 %v464
        %502 = vmatprep.subr.mxu0 0.0
        %503 = vmatpush1.msra.mxu0 %v465
        %504 = vmatprep.subr.mxu0 0.0
        %505 = vmatpush1.msra.mxu0 %v466
        %506 = vmatprep.subr.mxu0 0.0
        %507 = vmatpush1.msra.mxu0 %v467
        %508 = vmatprep.subr.mxu0 0.0
        %509 = vmatpush1.msra.mxu0 %v468
        %510 = vmatprep.subr.mxu0 0.0
        %511 = vmatpush1.msra.mxu0 %v469
        %512 = vmatprep.subr.mxu0 0.0
        %513 = vmatpush1.msra.mxu0 %v470
        %514 = vmatprep.subr.mxu0 0.0
        %515 = vmatpush1.msra.mxu0 %v471
        %516 = vmatprep.subr.mxu0 0.0
        %517 = vmatpush1.msra.mxu0 %v472
        %518 = vmatprep.subr.mxu0 0.0
        %519 = vmatpush1.msra.mxu0 0.0
        %520 = vmatprep.subr.mxu0 0.0
        %521 = vmatpush1.msra.mxu0 0.0
        %522 = vmatprep.subr.mxu0 0.0
        %523 = vmatpush1.msra.mxu0 0.0
        %524 = vmatprep.subr.mxu0 0.0
        %525 = vmatpush1.msra.mxu0 0.0
        %526 = vmatprep.subr.mxu0 0.0
        %527 = vmatpush1.msra.mxu0 0.0
        %528 = vmatprep.subr.mxu0 0.0
        %529 = vmatpush1.msra.mxu0 0.0
        %530 = vmatprep.subr.mxu0 0.0
        %531 = vmatpush1.msra.mxu0 0.0
        %532 = vmatprep.subr.mxu0 0.0
        %533 = vmatpush1.msra.mxu0 0.0
        %534 = vmatprep.subr.mxu0 0.0
        %535 = vmatpush1.msra.mxu0 0.0
        %536 = vmatprep.subr.mxu0 0.0
        %537 = vmatpush1.msra.mxu0 0.0
        %538 = vmatprep.subr.mxu0 0.0
        %539 = vmatpush1.msra.mxu0 0.0
        %540 = vmatprep.subr.mxu0 0.0
        %541 = vmatpush1.msra.mxu0 0.0
        %542 = vmatprep.mubr.f32.mxu0 %v476
        %543 = vmatmul.mubr.f32.gmra.mrb[0].mxu0 %v452
        %v544 = vpop.f32.mrb[0].mxu0
        %v545 = vadd.f32 0.0, %v544
        %v546 = vpop.f32.mrb[0].mxu0
        %547 = vdwg.mxu0
        %v548 = vld [vmem:[%s1] sm:$0x7]
        %s549 = scalar_lea.vmem %s1, 4
        %v550 = vld [vmem:[%s549] sm:$0x7]
        %552 = vrot.lane.b32.xlu0 %v545, 108
        %v553 = vpop.permute.xlu0 %552
        %vm554 = vcmask 23552
        %v556 = vsel %vm554, %v550, 0
        %v558 = vsel %vm386, %v553, 0
        %560 = vmatprep.subr.mxu0 0.0
        %561 = vmatpush1.msra.mxu0 %v558
        %562 = vmatprep.subr.mxu0 0.0
        %563 = vmatpush1.msra.mxu0 0.0
        %564 = vmatprep.subr.mxu0 0.0
        %565 = vmatpush1.msra.mxu0 0.0
        %566 = vmatprep.subr.mxu0 0.0
        %567 = vmatpush1.msra.mxu0 0.0
        %568 = vmatprep.subr.mxu0 0.0
        %569 = vmatpush1.msra.mxu0 0.0
        %570 = vmatprep.subr.mxu0 0.0
        %571 = vmatpush1.msra.mxu0 0.0
        %572 = vmatprep.subr.mxu0 0.0
        %573 = vmatpush1.msra.mxu0 0.0
        %574 = vmatprep.subr.mxu0 0.0
        %575 = vmatpush1.msra.mxu0 0.0
        %576 = vmatprep.subr.mxu0 0.0
        %577 = vmatpush1.msra.mxu0 0.0
        %578 = vmatprep.subr.mxu0 0.0
        %579 = vmatpush1.msra.mxu0 0.0
        %580 = vmatprep.subr.mxu0 0.0
        %581 = vmatpush1.msra.mxu0 0.0
        %582 = vmatprep.subr.mxu0 0.0
        %583 = vmatpush1.msra.mxu0 0.0
        %584 = vmatprep.subr.mxu0 0.0
        %585 = vmatpush1.msra.mxu0 0.0
        %586 = vmatprep.subr.mxu0 0.0
        %587 = vmatpush1.msra.mxu0 0.0
        %588 = vmatprep.subr.mxu0 0.0
        %589 = vmatpush1.msra.mxu0 0.0
        %590 = vmatprep.subr.mxu0 0.0
        %591 = vmatpush1.msra.mxu0 0.0
        %592 = vmatprep.subr.mxu0 0.0
        %593 = vmatpush1.msra.mxu0 0.0
        %594 = vmatprep.subr.mxu0 0.0
        %595 = vmatpush1.msra.mxu0 0.0
        %596 = vmatprep.subr.mxu0 0.0
        %597 = vmatpush1.msra.mxu0 0.0
        %598 = vmatprep.subr.mxu0 0.0
        %599 = vmatpush1.msra.mxu0 0.0
        %600 = vmatprep.subr.mxu0 0.0
        %601 = vmatpush1.msra.mxu0 0.0
        %602 = vmatprep.subr.mxu0 0.0
        %603 = vmatpush1.msra.mxu0 0.0
        %604 = vmatprep.subr.mxu0 0.0
        %605 = vmatpush1.msra.mxu0 0.0
        %606 = vmatprep.subr.mxu0 0.0
        %607 = vmatpush1.msra.mxu0 0.0
        %608 = vmatprep.subr.mxu0 0.0
        %609 = vmatpush1.msra.mxu0 0.0
        %610 = vmatprep.subr.mxu0 0.0
        %611 = vmatpush1.msra.mxu0 0.0
        %612 = vmatprep.subr.mxu0 0.0
        %613 = vmatpush1.msra.mxu0 0.0
        %614 = vmatprep.subr.mxu0 0.0
        %615 = vmatpush1.msra.mxu0 0.0
        %616 = vmatprep.subr.mxu0 0.0
        %617 = vmatpush1.msra.mxu0 0.0
        %618 = vmatprep.subr.mxu0 0.0
        %619 = vmatpush1.msra.mxu0 0.0
        %620 = vmatprep.subr.mxu0 0.0
        %621 = vmatpush1.msra.mxu0 0.0
        %622 = vmatprep.subr.mxu0 0.0
        %623 = vmatpush1.msra.mxu0 0.0
        %624 = vmatprep.mubr.f32.mxu0 0.0
        %625 = vmatmul.mubr.f32.gmra.mrb[0].mxu0 %v556
        %v626 = vpop.f32.mrb[0].mxu0
        %v627 = vadd.f32 0.0, %v626
        %v628 = vpop.f32.mrb[0].mxu0
        %629 = vdwg.mxu0
        %v631 = vsel %vm554, %v548, 0
        %v633 = vsel %vm386, %v545, 0
        %635 = vmatprep.subr.mxu0 0.0
        %636 = vmatpush1.msra.mxu0 %v633
        %637 = vmatprep.subr.mxu0 0.0
        %638 = vmatpush1.msra.mxu0 0.0
        %639 = vmatprep.subr.mxu0 0.0
        %640 = vmatpush1.msra.mxu0 0.0
        %641 = vmatprep.subr.mxu0 0.0
        %642 = vmatpush1.msra.mxu0 0.0
        %643 = vmatprep.subr.mxu0 0.0
        %644 = vmatpush1.msra.mxu0 0.0
        %645 = vmatprep.subr.mxu0 0.0
        %646 = vmatpush1.msra.mxu0 0.0
        %647 = vmatprep.subr.mxu0 0.0
        %648 = vmatpush1.msra.mxu0 0.0
        %649 = vmatprep.subr.mxu0 0.0
        %650 = vmatpush1.msra.mxu0 0.0
        %651 = vmatprep.subr.mxu0 0.0
        %652 = vmatpush1.msra.mxu0 0.0
        %653 = vmatprep.subr.mxu0 0.0
        %654 = vmatpush1.msra.mxu0 0.0
        %655 = vmatprep.subr.mxu0 0.0
        %656 = vmatpush1.msra.mxu0 0.0
        %657 = vmatprep.subr.mxu0 0.0
        %658 = vmatpush1.msra.mxu0 0.0
        %659 = vmatprep.subr.mxu0 0.0
        %660 = vmatpush1.msra.mxu0 0.0
        %661 = vmatprep.subr.mxu0 0.0
        %662 = vmatpush1.msra.mxu0 0.0
        %663 = vmatprep.subr.mxu0 0.0
        %664 = vmatpush1.msra.mxu0 0.0
        %665 = vmatprep.subr.mxu0 0.0
        %666 = vmatpush1.msra.mxu0 0.0
        %667 = vmatprep.subr.mxu0 0.0
        %668 = vmatpush1.msra.mxu0 0.0
        %669 = vmatprep.subr.mxu0 0.0
        %670 = vmatpush1.msra.mxu0 0.0
        %671 = vmatprep.subr.mxu0 0.0
        %672 = vmatpush1.msra.mxu0 0.0
        %673 = vmatprep.subr.mxu0 0.0
        %674 = vmatpush1.msra.mxu0 0.0
        %675 = vmatprep.subr.mxu0 0.0
        %676 = vmatpush1.msra.mxu0 0.0
        %677 = vmatprep.subr.mxu0 0.0
        %678 = vmatpush1.msra.mxu0 0.0
        %679 = vmatprep.subr.mxu0 0.0
        %680 = vmatpush1.msra.mxu0 0.0
        %681 = vmatprep.subr.mxu0 0.0
        %682 = vmatpush1.msra.mxu0 0.0
        %683 = vmatprep.subr.mxu0 0.0
        %684 = vmatpush1.msra.mxu0 0.0
        %685 = vmatprep.subr.mxu0 0.0
        %686 = vmatpush1.msra.mxu0 0.0
        %687 = vmatprep.subr.mxu0 0.0
        %688 = vmatpush1.msra.mxu0 0.0
        %689 = vmatprep.subr.mxu0 0.0
        %690 = vmatpush1.msra.mxu0 0.0
        %691 = vmatprep.subr.mxu0 0.0
        %692 = vmatpush1.msra.mxu0 0.0
        %693 = vmatprep.subr.mxu0 0.0
        %694 = vmatpush1.msra.mxu0 0.0
        %695 = vmatprep.subr.mxu0 0.0
        %696 = vmatpush1.msra.mxu0 0.0
        %697 = vmatprep.subr.mxu0 0.0
        %698 = vmatpush1.msra.mxu0 0.0
        %699 = vmatprep.mubr.f32.mxu0 0.0
        %700 = vmatmul.mubr.f32.gmra.mrb[0].mxu0 %v631
        %v701 = vpop.f32.mrb[0].mxu0
        %v702 = vadd.f32 %v627, %v701
        %v703 = vpop.f32.mrb[0].mxu0
        %704 = vdwg.mxu0
        %s705 = scalar_lea.vmem %s1, 8
        %v706 = vld [vmem:[%s705] sm:$0x7]
        %707 = vrot.lane.b32.xlu0 %v545, 88
        %v708 = vpop.permute.xlu0 %707
        %v710 = vsel %vm554, %v706, 0
        %v712 = vsel %vm386, %v708, 0
        %714 = vmatprep.subr.mxu0 0.0
        %715 = vmatpush1.msra.mxu0 %v712
        %716 = vmatprep.subr.mxu0 0.0
        %717 = vmatpush1.msra.mxu0 0.0
        %718 = vmatprep.subr.mxu0 0.0
        %719 = vmatpush1.msra.mxu0 0.0
        %720 = vmatprep.subr.mxu0 0.0
        %721 = vmatpush1.msra.mxu0 0.0
        %722 = vmatprep.subr.mxu0 0.0
        %723 = vmatpush1.msra.mxu0 0.0
        %724 = vmatprep.subr.mxu0 0.0
        %725 = vmatpush1.msra.mxu0 0.0
        %726 = vmatprep.subr.mxu0 0.0
        %727 = vmatpush1.msra.mxu0 0.0
        %728 = vmatprep.subr.mxu0 0.0
        %729 = vmatpush1.msra.mxu0 0.0
        %730 = vmatprep.subr.mxu0 0.0
        %731 = vmatpush1.msra.mxu0 0.0
        %732 = vmatprep.subr.mxu0 0.0
        %733 = vmatpush1.msra.mxu0 0.0
        %734 = vmatprep.subr.mxu0 0.0
        %735 = vmatpush1.msra.mxu0 0.0
        %736 = vmatprep.subr.mxu0 0.0
        %737 = vmatpush1.msra.mxu0 0.0
        %738 = vmatprep.subr.mxu0 0.0
        %739 = vmatpush1.msra.mxu0 0.0
        %740 = vmatprep.subr.mxu0 0.0
        %741 = vmatpush1.msra.mxu0 0.0
        %742 = vmatprep.subr.mxu0 0.0
        %743 = vmatpush1.msra.mxu0 0.0
        %744 = vmatprep.subr.mxu0 0.0
        %745 = vmatpush1.msra.mxu0 0.0
        %746 = vmatprep.subr.mxu0 0.0
        %747 = vmatpush1.msra.mxu0 0.0
        %748 = vmatprep.subr.mxu0 0.0
        %749 = vmatpush1.msra.mxu0 0.0
        %750 = vmatprep.subr.mxu0 0.0
        %751 = vmatpush1.msra.mxu0 0.0
        %752 = vmatprep.subr.mxu0 0.0
        %753 = vmatpush1.msra.mxu0 0.0
        %754 = vmatprep.subr.mxu0 0.0
        %755 = vmatpush1.msra.mxu0 0.0
        %756 = vmatprep.subr.mxu0 0.0
        %757 = vmatpush1.msra.mxu0 0.0
        %758 = vmatprep.subr.mxu0 0.0
        %759 = vmatpush1.msra.mxu0 0.0
        %760 = vmatprep.subr.mxu0 0.0
        %761 = vmatpush1.msra.mxu0 0.0
        %762 = vmatprep.subr.mxu0 0.0
        %763 = vmatpush1.msra.mxu0 0.0
        %764 = vmatprep.subr.mxu0 0.0
        %765 = vmatpush1.msra.mxu0 0.0
        %766 = vmatprep.subr.mxu0 0.0
        %767 = vmatpush1.msra.mxu0 0.0
        %768 = vmatprep.subr.mxu0 0.0
        %769 = vmatpush1.msra.mxu0 0.0
        %770 = vmatprep.subr.mxu0 0.0
        %771 = vmatpush1.msra.mxu0 0.0
        %772 = vmatprep.subr.mxu0 0.0
        %773 = vmatpush1.msra.mxu0 0.0
        %774 = vmatprep.subr.mxu0 0.0
        %775 = vmatpush1.msra.mxu0 0.0
        %776 = vmatprep.subr.mxu0 0.0
        %777 = vmatpush1.msra.mxu0 0.0
        %778 = vmatprep.mubr.f32.mxu0 0.0
        %779 = vmatmul.mubr.f32.gmra.mrb[0].mxu0 %v710
        %v780 = vpop.f32.mrb[0].mxu0
        %v781 = vadd.f32 0.0, %v780
        %v782 = vpop.f32.mrb[0].mxu0
        %783 = vdwg.mxu0
        %v784 = vadd.f32 %v702, %v781
        %v785 = vld [vmem:[%s3] sm:$0x7]
        %787 = vset.pattern.permute.xlu0 0
        %788 = vperm.xlu0 %787, %v785
        %v789 = vpop.permute.xlu0 %788
        %v791 = vadd.f32 %v784, %v789
        %v792 = vmax.f32 %v791, 0.0
        %v793 = vld [vmem:[%s2] sm:$0x7]
        %v794 = vld [vmem:[%s4] sm:$0x7]
        %796 = vset.pattern.permute.xlu0 0
        %797 = vperm.xlu0 %796, %v794
        %v798 = vpop.permute.xlu0 %797
        %v801 = vsel %vm554, %v793, 0
        %v804 = vsel %vm386, %v792, 0
        %806 = vmatprep.subr.mxu0 0.0
        %807 = vmatpush1.msra.mxu0 %v804
        %808 = vmatprep.subr.mxu0 0.0
        %809 = vmatpush1.msra.mxu0 0.0
        %810 = vmatprep.subr.mxu0 0.0
        %811 = vmatpush1.msra.mxu0 0.0
        %812 = vmatprep.subr.mxu0 0.0
        %813 = vmatpush1.msra.mxu0 0.0
        %814 = vmatprep.subr.mxu0 0.0
        %815 = vmatpush1.msra.mxu0 0.0
        %816 = vmatprep.subr.mxu0 0.0
        %817 = vmatpush1.msra.mxu0 0.0
        %818 = vmatprep.subr.mxu0 0.0
        %819 = vmatpush1.msra.mxu0 0.0
        %820 = vmatprep.subr.mxu0 0.0
        %821 = vmatpush1.msra.mxu0 0.0
        %822 = vmatprep.subr.mxu0 0.0
        %823 = vmatpush1.msra.mxu0 0.0
        %824 = vmatprep.subr.mxu0 0.0
        %825 = vmatpush1.msra.mxu0 0.0
        %826 = vmatprep.subr.mxu0 0.0
        %827 = vmatpush1.msra.mxu0 0.0
        %828 = vmatprep.subr.mxu0 0.0
        %829 = vmatpush1.msra.mxu0 0.0
        %830 = vmatprep.subr.mxu0 0.0
        %831 = vmatpush1.msra.mxu0 0.0
        %832 = vmatprep.subr.mxu0 0.0
        %833 = vmatpush1.msra.mxu0 0.0
        %834 = vmatprep.subr.mxu0 0.0
        %835 = vmatpush1.msra.mxu0 0.0
        %836 = vmatprep.subr.mxu0 0.0
        %837 = vmatpush1.msra.mxu0 0.0
        %838 = vmatprep.subr.mxu0 0.0
        %839 = vmatpush1.msra.mxu0 0.0
        %840 = vmatprep.subr.mxu0 0.0
        %841 = vmatpush1.msra.mxu0 0.0
        %842 = vmatprep.subr.mxu0 0.0
        %843 = vmatpush1.msra.mxu0 0.0
        %844 = vmatprep.subr.mxu0 0.0
        %845 = vmatpush1.msra.mxu0 0.0
        %846 = vmatprep.subr.mxu0 0.0
        %847 = vmatpush1.msra.mxu0 0.0
        %848 = vmatprep.subr.mxu0 0.0
        %849 = vmatpush1.msra.mxu0 0.0
        %850 = vmatprep.subr.mxu0 0.0
        %851 = vmatpush1.msra.mxu0 0.0
        %852 = vmatprep.subr.mxu0 0.0
        %853 = vmatpush1.msra.mxu0 0.0
        %854 = vmatprep.subr.mxu0 0.0
        %855 = vmatpush1.msra.mxu0 0.0
        %856 = vmatprep.subr.mxu0 0.0
        %857 = vmatpush1.msra.mxu0 0.0
        %858 = vmatprep.subr.mxu0 0.0
        %859 = vmatpush1.msra.mxu0 0.0
        %860 = vmatprep.subr.mxu0 0.0
        %861 = vmatpush1.msra.mxu0 0.0
        %862 = vmatprep.subr.mxu0 0.0
        %863 = vmatpush1.msra.mxu0 0.0
        %864 = vmatprep.subr.mxu0 0.0
        %865 = vmatpush1.msra.mxu0 0.0
        %866 = vmatprep.subr.mxu0 0.0
        %867 = vmatpush1.msra.mxu0 0.0
        %868 = vmatprep.subr.mxu0 0.0
        %869 = vmatpush1.msra.mxu0 0.0
        %870 = vmatprep.mubr.f32.mxu0 0.0
        %871 = vmatmul.mubr.f32.gmra.mrb[0].mxu0 %v801
        %v872 = vpop.f32.mrb[0].mxu0
        %v873 = vadd.f32 %v798, %v872
        %v874 = vpop.f32.mrb[0].mxu0
        %875 = vdwg.mxu0
        %v876 = vmax.f32 %v873, 0.0
        %vm877 = vcmask 157696
        %878 = vst.msk [vmem:[%s275] sm:$0x7] %vm877, %v876
      $region52: #{tpu_custom_call.1} parent=43 // pred_fallthru
        _
      %p879 = scmp.lt.s32.totalorder %s21, 1
      %s880 = scalar_select %p879, %s21, 1
      %s881 = smul.addr %s880, 4
      %s882 = scalar_lea.vmem %s6, %s881
      // Predicated region
      $region53: #{tpu_custom_call.1} parent=43 // pred_check
        %p883 = pneg %p180
      $region54: #{tpu_custom_call.1} parent=43 // pred_check_branch
        %885 = sbr.rel (%p883) target = $region56
      $region55: #{tpu_custom_call.1} parent=43 // pred_region
        _
      $region56: #{tpu_custom_call.1} parent=43 // pred_fallthru
        _
    $region44: #{tpu_custom_call.1} parent=5 // pred_fallthru
      _
    %p886 = scmp.le.s32.totalorder 2, %s12
    // Predicated region
    $region57: #{tpu_custom_call.1} parent=5 // pred_check
      %p887 = pneg %p886
    $region58: #{tpu_custom_call.1} parent=5 // pred_check_branch
      %889 = sbr.rel (%p887) target = $region60
    $region59: #{tpu_custom_call.1} parent=5 // pred_region
      %s890 = ssub.s32 %s12, 2
      // Predicated region
      $region61: #{tpu_custom_call.1} parent=59 // pred_check
        %p891 = pneg %p186
      $region62: #{tpu_custom_call.1} parent=59 // pred_check_branch
        %893 = sbr.rel (%p891) target = $region64
      $region63: #{tpu_custom_call.1} parent=59 // pred_region
        %p894 = scmp.lt.s32.totalorder %s23, 1
        %s895 = scalar_select %p894, %s23, 1
        %s896 = smul.addr %s895, 4
        %s897 = scalar_lea.vmem %s6, %s896
      $region64: #{tpu_custom_call.1} parent=59 // pred_fallthru
        _
    $region60: #{tpu_custom_call.1} parent=5 // pred_fallthru
      _
  $region6: #{tpu_custom_call.1} parent=0 // loop_footer
    %s16 = sadd.s32 1, %s12
  $region7: #{tpu_custom_call.1} parent=0 // loop_footer_branch
    %11 = sbr.rel target = $region3
  $region8: #{tpu_custom_call.1} parent=0 // loop_exit
    _

</llo_original>
